<compile_context>
chip_gen: v6e
topology: v6e:2x2x1
jax: 0.10.0
libtpu: 0.0.40
codegen_flags: <defaults>
</compile_context>

<pallas_src>
import functools
import math

import jax
import jax.numpy as jnp
from jax import lax
from jax.experimental import pallas as pl
from jax.experimental.pallas import tpu as pltpu

LN_EPS = 1e-12  # HF BERT layer_norm_eps default


# --------------------------- hardware-aware config -----------------------------

@functools.lru_cache(maxsize=None)
def _vmem_limit_bytes():
    """Generation-aware scoped-VMEM limit (v5e/v6e: 128 MiB phys, v7x: 64 MiB phys)."""
    cap = None
    try:
        cap = int(pltpu.get_tpu_info().vmem_capacity_bytes)
    except Exception:
        cap = None
    if cap is None:
        try:
            kind = jax.devices()[0].device_kind.lower()
            cap = (64 << 20) if "v7" in kind else (128 << 20)
        except Exception:
            cap = 64 << 20
    return int(min(cap - (16 << 20), 100 << 20))


@functools.lru_cache(maxsize=None)
def _softmax_exp_dtype():
    """bf16 exp on v6e/v7x (bf16 EUP path); f32 on v5e and older (no bf16 VPU/EUP)."""
    try:
        kind = jax.devices()[0].device_kind.lower()
    except Exception:
        return jnp.float32
    if "v6" in kind or "v7" in kind:
        return jnp.bfloat16
    return jnp.float32


@functools.lru_cache(maxsize=None)
def _buffered_supported():
    """Probe once whether pipeline_mode=pl.Buffered(1) is accepted by this JAX/Mosaic."""
    try:
        spec = pl.BlockSpec((8, 128), lambda i: (0, 0), pipeline_mode=pl.Buffered(1))
    except Exception:
        return False
    try:
        def _k(x_ref, o_ref):
            o_ref[...] = x_ref[...] + 1.0
        out = pl.pallas_call(
            _k,
            out_shape=jax.ShapeDtypeStruct((8, 128), jnp.float32),
            grid=(1,),
            in_specs=[spec],
            out_specs=pl.BlockSpec((8, 128), lambda i: (0, 0)),
        )(jnp.zeros((8, 128), jnp.float32))
        jax.block_until_ready(out)
        return True
    except Exception:
        return False


def _resident_spec(shape, index_map):
    """Single-buffered BlockSpec for blocks whose index never changes (weights/LN params)."""
    if _buffered_supported():
        return pl.BlockSpec(shape, index_map, pipeline_mode=pl.Buffered(1))
    return pl.BlockSpec(shape, index_map)


def _pick_row_tile(m, h, i, vmem_budget):
    """FFN row tile: >=128 rows when possible, as large as the VMEM budget allows."""
    per_row = 4 * i + 6 * h + 2 * i              # f32 intermediate + f32 in/out + bf16 temps
    weights = 4 * h * i + 8 * (i + 3 * h)        # bf16 wi + wo2 + biases/LN params (rough)
    avail = max(vmem_budget - weights - (8 << 20), 1 << 20)
    cap = int(max(128, min(1024, avail // max(per_row, 1))))
    cap = max(8, (cap // 8) * 8)
    if m <= cap:
        return m
    for c in (1024, 512, 256, 128):
        if c <= cap and m % c == 0:
            return c
    return cap   # ragged: grid uses pl.cdiv, Pallas masks the tail block


# --------------------------- in-kernel helpers ---------------------------------

def _ln(x, g, b):
    """LayerNorm over last axis in f32. x:(R,H); g,b:(1,H)."""
    mu = jnp.mean(x, axis=-1, keepdims=True)
    xc = x - mu
    var = jnp.mean(xc * xc, axis=-1, keepdims=True)
    return xc * jax.lax.rsqrt(var + LN_EPS) * g + b


# --------------------------- Pallas kernels ------------------------------------

def _embed_ln_kernel(x_ref, ctx_ref, g_ref, beta_ref, o_ref):
    """One batch element: LN(word+pos+type) then LN(. + ctx) (both use the embedding LN)."""
    x = x_ref[0].astype(jnp.float32)                  # (S,H)
    g = g_ref[...]
    b = beta_ref[...]
    e1 = _ln(x, g, b)
    e2 = _ln(e1 + ctx_ref[0].astype(jnp.float32), g, b)   # ctx broadcast per row
    o_ref[0] = e2.astype(o_ref.dtype)


def _attn_block_kernel(h_ref, mask_ref, wqkv_ref, bqkv_ref, wo_ref, bo_ref,
                       g_ref, beta_ref, o_ref, ctx_ref, *,
                       num_heads, head_dim, exp_dtype):
    """One (batch, head) grid step of the fused attention block.

    Per step: per-head QKV projection (full-depth K=H matmul) -> softmax(QK^T + raw mask) V
    -> stash this head's context in VMEM scratch.  On the last head: lane-concat all heads,
    ONE (S,H)@(H,H) output projection, bias + residual + LayerNorm.
    """
    hd = pl.program_id(1)
    dh = head_dim

    h = h_ref[0]                                       # (S,H) bf16, resident across heads
    # Per-head fused QKV projection; 1/sqrt(dh) folded into the Q columns at init.
    qkv = jnp.dot(h, wqkv_ref[0],
                  preferred_element_type=jnp.float32) + bqkv_ref[0]       # (S,3*dh) f32
    q = qkv[:, 0 * dh:1 * dh].astype(jnp.bfloat16)
    k = qkv[:, 1 * dh:2 * dh].astype(jnp.bfloat16)
    v = qkv[:, 2 * dh:3 * dh].astype(jnp.bfloat16)

    # Scores: contract last dims (A @ B^T) without materializing a transpose value.
    s = lax.dot_general(q, k, (((1,), (1,)), ((), ())),
                        preferred_element_type=jnp.float32)               # (S,S) f32
    # NB: the PyTorch module feeds attention_mask.unsqueeze(1) straight into BertEncoder,
    # so the RAW 0/1 mask is added to the scores — reproduced verbatim.
    s = s + mask_ref[0].astype(jnp.float32)

    m = jnp.max(s, axis=-1, keepdims=True)                                # f32
    p = jnp.exp((s - m).astype(exp_dtype))             # bf16 exp on v6e/v7x, f32 on v5e
    l = jnp.sum(p.astype(jnp.float32), axis=-1, keepdims=True)            # f32
    ctx = jnp.dot(p.astype(jnp.bfloat16), v,
                  preferred_element_type=jnp.float32)                     # (S,dh) f32
    ctx = ctx * pl.reciprocal(l, approx=True)          # deferred softmax norm (EUP slot)
    ctx_ref[hd] = ctx.astype(jnp.bfloat16)             # cheap major-dim store to scratch

    @pl.when(hd == num_heads - 1)
    def _():
        # Concat heads along lanes, then ONE full-depth (S,H)@(H,H) output projection.
        cc = jnp.concatenate([ctx_ref[i] for i in range(num_heads)], axis=-1)   # (S,H) bf16
        attn = jnp.dot(cc, wo_ref[...], preferred_element_type=jnp.float32)
        x = attn + bo_ref[...] + h.astype(jnp.float32)     # bias + residual
        o_ref[0] = _ln(x, g_ref[...], beta_ref[...]).astype(o_ref.dtype)


def _ffn_kernel(h_ref, wi_ref, bi_ref, wo2_ref, bo2_ref, g_ref, beta_ref, o_ref):
    """Fused FFN block on one row-tile: wi -> GELU -> wo2 -> residual -> LayerNorm."""
    h = h_ref[...]                                     # (tm,H) bf16
    t = jnp.dot(h, wi_ref[...], preferred_element_type=jnp.float32) + bi_ref[...]
    # TODO(synk): HF BERT uses exact erf-GELU; tanh-approx GELU used here.
    t = 0.5 * t * (1.0 + jnp.tanh(0.7978845608028654 * (t + 0.044715 * t * t * t)))
    ff = jnp.dot(t.astype(jnp.bfloat16), wo2_ref[...],
                 preferred_element_type=jnp.float32) + bo2_ref[...]
    x = ff + h.astype(jnp.float32)                     # residual
    o_ref[...] = _ln(x, g_ref[...], beta_ref[...]).astype(o_ref.dtype)


def _head_kernel(cls_ref, ffw_ref, ffb_ref, vw_ref, o_ref):
    """logits = tanh(cls @ ff_w + ff_b) @ v_w_padded  (lane-dense 128-wide output)."""
    x = cls_ref[...]                                   # (B,H) bf16
    t = jnp.tanh(jnp.dot(x, ffw_ref[...], preferred_element_type=jnp.float32)
                 + ffb_ref[...])
    o_ref[...] = jnp.dot(t.astype(jnp.bfloat16), vw_ref[...],
                         preferred_element_type=jnp.float32)


# --------------------------- pallas_call wrappers -------------------------------

def embed_ln(x_sum, ctx, g, beta):
    B, S, H = x_sum.shape
    return pl.pallas_call(
        _embed_ln_kernel,
        out_shape=jax.ShapeDtypeStruct((B, S, H), jnp.bfloat16),
        grid=(B,),
        in_specs=[
            pl.BlockSpec((1, S, H), lambda b: (b, 0, 0)),
            pl.BlockSpec((1, 1, H), lambda b: (b, 0, 0)),
            _resident_spec((1, H), lambda b: (0, 0)),
            _resident_spec((1, H), lambda b: (0, 0)),
        ],
        out_specs=pl.BlockSpec((1, S, H), lambda b: (b, 0, 0)),
        compiler_params=pltpu.CompilerParams(
            dimension_semantics=("parallel",)),
    )(x_sum, ctx, g, beta)


def attn_block(h, mask, wqkv_h, bqkv_h, wo, bo, g, beta, *, num_heads):
    B, S, H = h.shape
    dh = H // num_heads
    kern = functools.partial(_attn_block_kernel, num_heads=num_heads,
                             head_dim=dh, exp_dtype=_softmax_exp_dtype())
    return pl.pallas_call(
        kern,
        out_shape=jax.ShapeDtypeStruct((B, S, H), jnp.bfloat16),
        grid=(B, num_heads),
        in_specs=[
            pl.BlockSpec((1, S, H), lambda b, hd: (b, 0, 0)),        # h (resident per batch)
            pl.BlockSpec((1, 1, S), lambda b, hd: (b, 0, 0)),        # raw 0/1 mask
            pl.BlockSpec((1, H, 3 * dh), lambda b, hd: (hd, 0, 0)),  # per-head QKV panel (DMA-side head slicing)
            pl.BlockSpec((1, 1, 3 * dh), lambda b, hd: (hd, 0, 0)),  # per-head QKV bias
            _resident_spec((H, H), lambda b, hd: (0, 0)),            # wo (single-buffered)
            _resident_spec((1, H), lambda b, hd: (0, 0)),            # bo
            _resident_spec((1, H), lambda b, hd: (0, 0)),            # ln1 gamma
            _resident_spec((1, H), lambda b, hd: (0, 0)),            # ln1 beta
        ],
        out_specs=pl.BlockSpec((1, S, H), lambda b, hd: (b, 0, 0)),
        scratch_shapes=[pltpu.VMEM((num_heads, S, dh), jnp.bfloat16)],
        compiler_params=pltpu.CompilerParams(
            dimension_semantics=("parallel", "arbitrary"),
            vmem_limit_bytes=_vmem_limit_bytes()),
    )(h, mask, wqkv_h, bqkv_h, wo, bo, g, beta)


def ffn_block(h, wi, bi, wo2, bo2, g, beta):
    M, H = h.shape
    I = wi.shape[1]
    tm = _pick_row_tile(M, H, I, _vmem_limit_bytes())
    return pl.pallas_call(
        _ffn_kernel,
        out_shape=jax.ShapeDtypeStruct((M, H), jnp.bfloat16),
        grid=(pl.cdiv(M, tm),),
        in_specs=[
            pl.BlockSpec((tm, H), lambda i: (i, 0)),
            _resident_spec((H, I), lambda i: (0, 0)),
            _resident_spec((1, I), lambda i: (0, 0)),
            _resident_spec((I, H), lambda i: (0, 0)),
            _resident_spec((1, H), lambda i: (0, 0)),
            _resident_spec((1, H), lambda i: (0, 0)),
            _resident_spec((1, H), lambda i: (0, 0)),
        ],
        out_specs=pl.BlockSpec((tm, H), lambda i: (i, 0)),
        compiler_params=pltpu.CompilerParams(
            dimension_semantics=("parallel",),
            vmem_limit_bytes=_vmem_limit_bytes()),
    )(h, wi, bi, wo2, bo2, g, beta)


def head(cls_tok, ffw, ffb, vw_pad):
    B = cls_tok.shape[0]
    return pl.pallas_call(
        _head_kernel,
        out_shape=jax.ShapeDtypeStruct((B, vw_pad.shape[1]), jnp.float32),
        in_specs=[pl.BlockSpec(memory_space=pltpu.MemorySpace.VMEM)] * 4,
        out_specs=pl.BlockSpec(memory_space=pltpu.MemorySpace.VMEM),
    )(cls_tok, ffw, ffb, vw_pad)


# --------------------------- model forward (glue + kernels) ---------------------

def in_xfer_head_forward(params, input_ids, token_type_ids, context_ids,
                         attention_mask, labels=None):
    B, S = input_ids.shape
    H = params["word_emb"].shape[1]
    nh = params["num_heads"]

    # --- embedding gathers (XLA glue; no clean rectangular BlockSpec gather) ---
    word_e = jnp.take(params["word_emb"], input_ids, axis=0)           # (B,S,H)
    pos_e = params["pos_emb"][:S][None, :, :]                          # (1,S,H)
    tok_e = jnp.take(params["type_emb"], token_type_ids, axis=0)       # (B,S,H)
    ctx_e = jnp.take(params["ctx_emb"], context_ids[:, 0], axis=0)     # (B,H)

    # bf16 HBM hand-off (halves the embedding-stage bytes); LN math stays f32 in-kernel.
    x_sum = (word_e + pos_e + tok_e).astype(jnp.bfloat16)              # (B,S,H)

    # Fused: LN(word+pos+type) then LN(. + ctx)  (dropout = identity)
    h = embed_ln(x_sum, ctx_e.reshape(B, 1, H),
                 params["emb_ln_g"], params["emb_ln_b"])               # (B,S,H) bf16

    # Raw 0/1 mask, broadcast inside the attention kernel (never materialized BxnhxSxS).
    mask = attention_mask.astype(jnp.float32).reshape(B, 1, S)

    # --- BERT encoder layers: 2 fused kernels per layer ---
    for layer in params["layers"]:
        h = attn_block(h, mask, layer["wqkv_h"], layer["bqkv_h"], layer["wo"],
                       layer["bo"], layer["ln1_g"], layer["ln1_b"], num_heads=nh)
        h2 = ffn_block(h.reshape(B * S, H), layer["wi"], layer["bi"],
                       layer["wo2"], layer["bo2"], layer["ln2_g"], layer["ln2_b"])
        h = h2.reshape(B, S, H)

    cls = h[:, 0]                                                      # (B,H) bf16, [CLS]
    logits = head(cls, params["ff_w"], params["ff_b"], params["v_w_pad"])[:, 0]

    loss = None
    if labels is not None:
        z = logits.astype(jnp.float32)
        y = labels.astype(jnp.float32)
        # binary_cross_entropy_with_logits, mean reduction
        loss = jnp.mean(jnp.maximum(z, 0.0) - z * y + jnp.log1p(jnp.exp(-jnp.abs(z))))
    return loss, logits


# --------------------------- deterministic parameter init -----------------------

def init_params(key, *, vocab=100, hidden=32, max_pos=16, type_vocab=2,
                ctx_vocab=5, num_layers=2, num_heads=2, intermediate=64):
    keys = jax.random.split(key, 8 + num_layers)
    dh = hidden // num_heads
    scale = 1.0 / math.sqrt(dh)

    def nrm(k, shape, dtype=jnp.float32):
        return (0.02 * jax.random.normal(k, shape)).astype(dtype)

    def zeros(n):
        return jnp.zeros((1, n), jnp.float32)

    def ones(n):
        return jnp.ones((1, n), jnp.float32)

    v_w = nrm(keys[5], (hidden, 1))                    # nn.Linear(hid, 1, bias=False)
    v_w_pad = jnp.zeros((hidden, 128), jnp.bfloat16).at[:, :1].set(
        v_w.astype(jnp.bfloat16))                      # lane-dense padded head weight

    params = dict(
        num_heads=num_heads,
        word_emb=nrm(keys[0], (vocab, hidden)),
        pos_emb=nrm(keys[1], (max_pos, hidden)),
        type_emb=nrm(keys[2], (type_vocab, hidden)),
        ctx_emb=nrm(keys[3], (ctx_vocab, hidden)),
        emb_ln_g=ones(hidden),
        emb_ln_b=zeros(hidden),
        ff_w=nrm(keys[4], (hidden, hidden), jnp.bfloat16),   # stored transposed: (in,out)
        ff_b=zeros(hidden),
        v_w_pad=v_w_pad,
        layers=[],
    )
    for i in range(num_layers):
        lk = jax.random.split(keys[8 + i], 6)
        wq = nrm(lk[0], (hidden, hidden))
        wk = nrm(lk[1], (hidden, hidden))
        wv = nrm(lk[2], (hidden, hidden))
        bq = jnp.zeros((hidden,), jnp.float32)
        bk = jnp.zeros((hidden,), jnp.float32)
        bv = jnp.zeros((hidden,), jnp.float32)
        # Fold 1/sqrt(dh) into the Q projection (weights AND bias).
        wq = wq * scale
        bq = bq * scale
        # Per-head QKV panels (nh, H, 3*dh): the attention kernel's head slicing is done
        # by the BlockSpec DMA; each head's matmul contracts over the full K=H depth.
        wqkv_h = jnp.stack(
            [jnp.concatenate([wq[:, h0:h0 + dh], wk[:, h0:h0 + dh], wv[:, h0:h0 + dh]],
                             axis=1)
             for h0 in range(0, hidden, dh)], axis=0).astype(jnp.bfloat16)     # (nh,H,3dh)
        bqkv_h = jnp.stack(
            [jnp.concatenate([bq[h0:h0 + dh], bk[h0:h0 + dh], bv[h0:h0 + dh]])[None, :]
             for h0 in range(0, hidden, dh)], axis=0).astype(jnp.float32)      # (nh,1,3dh)
        params["layers"].append(dict(
            wqkv_h=wqkv_h, bqkv_h=bqkv_h,
            wo=nrm(lk[3], (hidden, hidden), jnp.bfloat16), bo=zeros(hidden),
            ln1_g=ones(hidden), ln1_b=zeros(hidden),
            wi=nrm(lk[4], (hidden, intermediate), jnp.bfloat16), bi=zeros(intermediate),
            wo2=nrm(lk[5], (intermediate, hidden), jnp.bfloat16), bo2=zeros(hidden),
            ln2_g=ones(hidden), ln2_b=zeros(hidden),
        ))
    return params


# --------------------------- main ------------------------------------------------

if __name__ == "__main__":
    key = jax.random.PRNGKey(0)
    pkey, dkey = jax.random.split(key)
    params = init_params(pkey)

    B, S = 2, 8
    k1, k2, k3, k4 = jax.random.split(dkey, 4)
    input_ids = jax.random.randint(k1, (B, S), 0, 100, dtype=jnp.int32)
    token_type_ids = jax.random.randint(k2, (B, S), 0, 2, dtype=jnp.int32)
    context_ids = jax.random.randint(k3, (B, 1), 0, 5, dtype=jnp.int32)   # one context id per sequence
    attention_mask = jnp.ones((B, S), jnp.float32)
    labels = jax.random.randint(k4, (B,), 0, 2).astype(jnp.float32)

    loss, logits = in_xfer_head_forward(params, input_ids, token_type_ids,
                                        context_ids, attention_mask, labels)
    jax.block_until_ready((loss, logits))
    assert logits.shape == (B,)
    print("KERNEL_OK")
</pallas_src>

<mosaic_0001>
module attributes {stable_mosaic.version = 11 : i64} {
  func.func @_k(%arg0: i32, %arg1: memref<8x128xf32, #tpu.memory_space<vmem>>, %arg2: memref<8x128xf32, #tpu.memory_space<vmem>>) attributes {dimension_semantics = [#tpu.dimension_semantics<arbitrary>], iteration_bounds = array<i64: 1>, scalar_prefetch = 0 : i64, scratch_operands = 0 : i64, tpu.core_type = #tpu.core_type<tc>, window_params = [{pipeline_mode = #tpu.pipeline_mode<synchronous>, transform_indices = @transform_0, window_bounds = array<i64: 8, 128>}, {pipeline_mode = #tpu.pipeline_mode<synchronous>, transform_indices = @transform_1, window_bounds = array<i64: 8, 128>}]} {
    %c0 = arith.constant 0 : index
    %c0_0 = arith.constant 0 : index
    %0 = vector.load %arg1[%c0, %c0_0] : memref<8x128xf32, #tpu.memory_space<vmem>>, vector<8x128xf32>
    %cst = arith.constant 1.000000e+00 : f32
    %1 = vector.broadcast %cst : f32 to vector<8x128xf32>
    %2 = arith.addf %0, %1 : vector<8x128xf32>
    %c0_1 = arith.constant 0 : index
    %c0_2 = arith.constant 0 : index
    %3 = vector.load %arg2[%c0_1, %c0_2] : memref<8x128xf32, #tpu.memory_space<vmem>>, vector<8x128xf32>
    tpu.vector_store %arg2[%c0_1, %c0_2], %2 {strides = array<i32>} : memref<8x128xf32, #tpu.memory_space<vmem>>, vector<8x128xf32>,
    return
  }
  func.func @transform_0(%arg0: i32) -> (i32, i32) {
    %c0_i32 = arith.constant 0 : i32
    %c0_i32_0 = arith.constant 0 : i32
    %c0_i32_1 = arith.constant 0 : i32
    return %c0_i32, %c0_i32_0 : i32, i32
  }
  func.func @transform_1(%arg0: i32) -> (i32, i32) {
    %c0_i32 = arith.constant 0 : i32
    %c0_i32_0 = arith.constant 0 : i32
    %c0_i32_1 = arith.constant 0 : i32
    return %c0_i32, %c0_i32_0 : i32, i32
  }
}

module attributes {stable_mosaic.version = 11 : i64} {
  func.func @_embed_ln_kernel(%arg0: i32, %arg1: memref<1x8x32xbf16, #tpu.memory_space<vmem>>, %arg2: memref<1x1x32xf32, #tpu.memory_space<vmem>>, %arg3: memref<1x32xf32, #tpu.memory_space<vmem>>, %arg4: memref<1x32xf32, #tpu.memory_space<vmem>>, %arg5: memref<1x8x32xbf16, #tpu.memory_space<vmem>>) attributes {dimension_semantics = [#tpu.dimension_semantics<parallel>], iteration_bounds = array<i64: 2>, scalar_prefetch = 0 : i64, scratch_operands = 0 : i64, tpu.core_type = #tpu.core_type<tc>, window_params = [{transform_indices = @transform_0, window_bounds = array<i64: 1, 8, 32>}, {transform_indices = @transform_1, window_bounds = array<i64: 1, 1, 32>}, {pipeline_mode = #tpu.pipeline_mode<synchronous>, transform_indices = @transform_2, window_bounds = array<i64: 1, 32>}, {pipeline_mode = #tpu.pipeline_mode<synchronous>, transform_indices = @transform_3, window_bounds = array<i64: 1, 32>}, {transform_indices = @transform_4, window_bounds = array<i64: 1, 8, 32>}]} {
    %c0 = arith.constant 0 : index
    %c0_0 = arith.constant 0 : index
    %c0_1 = arith.constant 0 : index
    %0 = vector.load %arg1[%c0, %c0_0, %c0_1] : memref<1x8x32xbf16, #tpu.memory_space<vmem>>, vector<1x8x32xbf16>
    %1 = vector.shape_cast %0 : vector<1x8x32xbf16> to vector<8x32xbf16>
    %2 = arith.extf %1 : vector<8x32xbf16> to vector<8x32xf32>
    %c0_2 = arith.constant 0 : index
    %c0_3 = arith.constant 0 : index
    %3 = vector.load %arg3[%c0_2, %c0_3] : memref<1x32xf32, #tpu.memory_space<vmem>>, vector<1x32xf32>
    %c0_4 = arith.constant 0 : index
    %c0_5 = arith.constant 0 : index
    %4 = vector.load %arg4[%c0_4, %c0_5] : memref<1x32xf32, #tpu.memory_space<vmem>>, vector<1x32xf32>
    %cst = arith.constant dense<0.000000e+00> : vector<8xf32>
    %5 = vector.multi_reduction <add>, %2, %cst [1] : vector<8x32xf32> to vector<8xf32>
    %6 = vector.shape_cast %5 : vector<8xf32> to vector<8x1xf32>
    %cst_6 = arith.constant 3.200000e+01 : f32
    %7 = vector.broadcast %cst_6 : f32 to vector<8x1xf32>
    %8 = arith.divf %6, %7 : vector<8x1xf32>
    %9 = vector.broadcast %8 : vector<8x1xf32> to vector<8x32xf32>
    %10 = arith.subf %2, %9 : vector<8x32xf32>
    %11 = arith.mulf %10, %10 : vector<8x32xf32>
    %cst_7 = arith.constant dense<0.000000e+00> : vector<8xf32>
    %12 = vector.multi_reduction <add>, %11, %cst_7 [1] : vector<8x32xf32> to vector<8xf32>
    %13 = vector.shape_cast %12 : vector<8xf32> to vector<8x1xf32>
    %cst_8 = arith.constant 3.200000e+01 : f32
    %14 = vector.broadcast %cst_8 : f32 to vector<8x1xf32>
    %15 = arith.divf %13, %14 : vector<8x1xf32>
    %cst_9 = arith.constant 9.99999996E-13 : f32
    %16 = vector.broadcast %cst_9 : f32 to vector<8x1xf32>
    %17 = arith.addf %15, %16 : vector<8x1xf32>
    %18 = math.rsqrt %17 : vector<8x1xf32>
    %19 = vector.broadcast %18 : vector<8x1xf32> to vector<8x32xf32>
    %20 = arith.mulf %10, %19 : vector<8x32xf32>
    %21 = vector.broadcast %3 : vector<1x32xf32> to vector<8x32xf32>
    %22 = arith.mulf %20, %21 : vector<8x32xf32>
    %23 = vector.broadcast %4 : vector<1x32xf32> to vector<8x32xf32>
    %24 = arith.addf %22, %23 : vector<8x32xf32>
    %c0_10 = arith.constant 0 : index
    %c0_11 = arith.constant 0 : index
    %c0_12 = arith.constant 0 : index
    %25 = vector.load %arg2[%c0_10, %c0_11, %c0_12] : memref<1x1x32xf32, #tpu.memory_space<vmem>>, vector<1x1x32xf32>
    %26 = vector.shape_cast %25 : vector<1x1x32xf32> to vector<1x32xf32>
    %27 = vector.broadcast %26 : vector<1x32xf32> to vector<8x32xf32>
    %28 = arith.addf %24, %27 : vector<8x32xf32>
    %cst_13 = arith.constant dense<0.000000e+00> : vector<8xf32>
    %29 = vector.multi_reduction <add>, %28, %cst_13 [1] : vector<8x32xf32> to vector<8xf32>
    %30 = vector.shape_cast %29 : vector<8xf32> to vector<8x1xf32>
    %cst_14 = arith.constant 3.200000e+01 : f32
    %31 = vector.broadcast %cst_14 : f32 to vector<8x1xf32>
    %32 = arith.divf %30, %31 : vector<8x1xf32>
    %33 = vector.broadcast %32 : vector<8x1xf32> to vector<8x32xf32>
    %34 = arith.subf %28, %33 : vector<8x32xf32>
    %35 = arith.mulf %34, %34 : vector<8x32xf32>
    %cst_15 = arith.constant dense<0.000000e+00> : vector<8xf32>
    %36 = vector.multi_reduction <add>, %35, %cst_15 [1] : vector<8x32xf32> to vector<8xf32>
    %37 = vector.shape_cast %36 : vector<8xf32> to vector<8x1xf32>
    %cst_16 = arith.constant 3.200000e+01 : f32
    %38 = vector.broadcast %cst_16 : f32 to vector<8x1xf32>
    %39 = arith.divf %37, %38 : vector<8x1xf32>
    %cst_17 = arith.constant 9.99999996E-13 : f32
    %40 = vector.broadcast %cst_17 : f32 to vector<8x1xf32>
    %41 = arith.addf %39, %40 : vector<8x1xf32>
    %42 = math.rsqrt %41 : vector<8x1xf32>
    %43 = vector.broadcast %42 : vector<8x1xf32> to vector<8x32xf32>
    %44 = arith.mulf %34, %43 : vector<8x32xf32>
    %45 = vector.broadcast %3 : vector<1x32xf32> to vector<8x32xf32>
    %46 = arith.mulf %44, %45 : vector<8x32xf32>
    %47 = vector.broadcast %4 : vector<1x32xf32> to vector<8x32xf32>
    %48 = arith.addf %46, %47 : vector<8x32xf32>
    %49 = arith.truncf %48 : vector<8x32xf32> to vector<8x32xbf16>
    %c0_18 = arith.constant 0 : index
    %c0_19 = arith.constant 0 : index
    %c0_20 = arith.constant 0 : index
    %50 = vector.load %arg5[%c0_18, %c0_19, %c0_20] : memref<1x8x32xbf16, #tpu.memory_space<vmem>>, vector<1x8x32xbf16>
    %51 = vector.shape_cast %50 : vector<1x8x32xbf16> to vector<8x32xbf16>
    %52 = vector.shape_cast %49 : vector<8x32xbf16> to vector<1x8x32xbf16>
    tpu.vector_store %arg5[%c0_18, %c0_19, %c0_20], %52 {strides = array<i32>} : memref<1x8x32xbf16, #tpu.memory_space<vmem>>, vector<1x8x32xbf16>,
    return
  }
  func.func @transform_0(%arg0: i32) -> (i32, i32, i32) {
    %c0_i32 = arith.constant 0 : i32
    %c0_i32_0 = arith.constant 0 : i32
    %c0_i32_1 = arith.constant 0 : i32
    return %arg0, %c0_i32, %c0_i32_0 : i32, i32, i32
  }
  func.func @transform_1(%arg0: i32) -> (i32, i32, i32) {
    %c0_i32 = arith.constant 0 : i32
    %c0_i32_0 = arith.constant 0 : i32
    %c0_i32_1 = arith.constant 0 : i32
    return %arg0, %c0_i32, %c0_i32_0 : i32, i32, i32
  }
  func.func @transform_2(%arg0: i32) -> (i32, i32) {
    %c0_i32 = arith.constant 0 : i32
    %c0_i32_0 = arith.constant 0 : i32
    %c0_i32_1 = arith.constant 0 : i32
    return %c0_i32, %c0_i32_0 : i32, i32
  }
  func.func @transform_3(%arg0: i32) -> (i32, i32) {
    %c0_i32 = arith.constant 0 : i32
    %c0_i32_0 = arith.constant 0 : i32
    %c0_i32_1 = arith.constant 0 : i32
    return %c0_i32, %c0_i32_0 : i32, i32
  }
  func.func @transform_4(%arg0: i32) -> (i32, i32, i32) {
    %c0_i32 = arith.constant 0 : i32
    %c0_i32_0 = arith.constant 0 : i32
    %c0_i32_1 = arith.constant 0 : i32
    return %arg0, %c0_i32, %c0_i32_0 : i32, i32, i32
  }
}

</mosaic_0001>

<llo_original>
// kernel: tpu_custom_call.1
$region0: #{tpu_custom_call.1}
  #allocation0 [shape = 'u32[]', space=smem, size = 0x4, offset = 0x4, fixed_abs, tag = 'smem constant byte address 0x4 - core index']
  #allocation1 [shape = 'u32[144,128]{1,0:T(1,128)}', space=vmem, size = 0x12000, scoped, tag = 'internal scratch']
  %s0 = inlined_call_operand.hbm [shape: f32[8,128], index: 0, kind: input, shape index: {}]
  %s1 = inlined_call_operand.hbm [shape: f32[8,128], index: 1, kind: output, shape index: {}]
  %s2 = sld [smem:[#allocation0]]
  $region18: #{tpu_custom_call.1} parent=0
    _
  %s4 = ssub.s32 1, %s2
  %s5 = scalar_select 0, %s4, %s2
  $region1: #{tpu_custom_call.1} parent=0
    #allocation2 [shape = 'u8[4096]{0}', space=vmem, size = 0x1000, scoped, tag = 'input window, operand 0, single buffered']
    #allocation3 [shape = 's32[1]{0}', space=sflag, size = 0x4, scoped, tag = 'scoped memory for tpu_custom_call.1']
    #allocation4 [shape = 's32[1]{0}', space=sflag, size = 0x4, scoped, tag = 'scoped memory for tpu_custom_call.1']
    #allocation5 [shape = 'u8[4096]{0}', space=vmem, size = 0x1000, scoped, tag = 'output window, operand 0, single buffered']
    %6 = vsyncpa [#allocation3], 0
    %7 = vsyncpa [#allocation4], 0
    // Predicated region
    $region2: #{tpu_custom_call.1} parent=1 // pred_check
      _
    $region3: #{tpu_custom_call.1} parent=1 // pred_check_branch
      %9 = sbr.rel (0) target = $region5
    $region4: #{tpu_custom_call.1} parent=1 // pred_region
      %s11 = ssub.s32 128, 128
      %12 = vsyncadd [#allocation3], %s11
      %s14 = sshll.u32 [#allocation2], 4
      %s15 = int_to_ptr.vmem [resolvable:$true] %s14
      %17 = dma.hbm_to_vmem [thread:$0]  %s0, 128, %s15, [#allocation3]
    $region5: #{tpu_custom_call.1} parent=1 // pred_fallthru
      _
    // Predicated region
    $region6: #{tpu_custom_call.1} parent=1 // pred_check
      _
    $region7: #{tpu_custom_call.1} parent=1 // pred_check_branch
      %19 = sbr.rel (0) target = $region9
    $region8: #{tpu_custom_call.1} parent=1 // pred_region
      %20 = dma.done [#allocation3], 128
    $region9: #{tpu_custom_call.1} parent=1 // pred_fallthru
      _
    %v21 = vld [vmem:[#allocation2] sm:$0xff]
    %v22 = vadd.f32 %v21, 1.0
    %23 = vst [vmem:[#allocation5] sm:$0xff] %v22
    // Predicated region
    $region10: #{tpu_custom_call.1} parent=1 // pred_check
      _
    $region11: #{tpu_custom_call.1} parent=1 // pred_check_branch
      %25 = sbr.rel (0) target = $region13
    $region12: #{tpu_custom_call.1} parent=1 // pred_region
      %s27 = ssub.s32 128, 128
      %28 = vsyncadd [#allocation4], %s27
      %s30 = sshll.u32 [#allocation5], 4
      %s31 = int_to_ptr.vmem [resolvable:$true] %s30
      %33 = dma.vmem_to_hbm [thread:$0]  %s31, 128, %s1, [#allocation4]
    $region13: #{tpu_custom_call.1} parent=1 // pred_fallthru
      _
    // Predicated region
    $region14: #{tpu_custom_call.1} parent=1 // pred_check
      _
    $region15: #{tpu_custom_call.1} parent=1 // pred_check_branch
      %35 = sbr.rel (0) target = $region17
    $region16: #{tpu_custom_call.1} parent=1 // pred_region
      %36 = dma.done [#allocation4], 128
    $region17: #{tpu_custom_call.1} parent=1 // pred_fallthru
      _
    %37 = vsyncpa [#allocation3], 1
    %38 = vsyncpa [#allocation4], 1

// kernel: tpu_custom_call.1
$region0: #{tpu_custom_call.1}
  #allocation0 [shape = 'u32[]', space=smem, size = 0x4, offset = 0x4, fixed_abs, tag = 'smem constant byte address 0x4 - core index']
  #allocation1 [shape = 'u32[144,128]{1,0:T(1,128)}', space=vmem, size = 0x12000, scoped, tag = 'internal scratch']
  %s0 = inlined_call_operand.hbm [shape: bf16[2,8,32], index: 0, kind: input, shape index: {}]
  %s1 = inlined_call_operand.hbm [shape: f32[2,1,32], index: 1, kind: input, shape index: {}]
  %s2 = inlined_call_operand.vmem [shape: f32[1,32], index: 2, kind: input, shape index: {}]
  %s3 = inlined_call_operand.vmem [shape: f32[1,32], index: 3, kind: input, shape index: {}]
  %s4 = inlined_call_operand.hbm [shape: bf16[2,8,32], index: 4, kind: output, shape index: {}]
  %s5 = sld [smem:[#allocation0]]
  $region57: #{tpu_custom_call.1} parent=0
    _
  %s7 = ssub.s32 1, %s5
  %s8 = scalar_select 0, %s7, %s5
  $region1: #{tpu_custom_call.1} parent=0
    #allocation2 [shape = 'u8[4096]{0}', space=vmem, size = 0x1000, scoped, tag = 'input window, operand 0']
    #allocation3 [shape = 's32[2]{0}', space=sflag, size = 0x8, scoped, tag = 'scoped memory for tpu_custom_call.1']
    #allocation4 [shape = 's32[2]{0}', space=sflag, size = 0x8, scoped, tag = 'scoped memory for tpu_custom_call.1']
    #allocation5 [shape = 'u8[1024]{0}', space=vmem, size = 0x400, scoped, tag = 'input window, operand 1']
    #allocation6 [shape = 's32[2]{0}', space=sflag, size = 0x8, scoped, tag = 'scoped memory for tpu_custom_call.1']
    #allocation7 [shape = 'u8[4096]{0}', space=vmem, size = 0x1000, scoped, tag = 'output window, operand 0']
    %9 = vsyncpa [#allocation3], 0
    %s10 = scalar_lea.sflag [#allocation3], 1
    %11 = vsyncpa %s10, 0
    %12 = vsyncpa [#allocation6], 0
    %s13 = scalar_lea.sflag [#allocation6], 1
    %14 = vsyncpa %s13, 0
    %15 = vsyncpa [#allocation4], 0
    %s16 = scalar_lea.sflag [#allocation4], 1
    %17 = vsyncpa %s16, 0
    loop: start=0, step=1, limit=4
    $region2: #{tpu_custom_call.1} parent=1 // loop_pre_header
      _
    $region3: #{tpu_custom_call.1} parent=1 // loop_header
      %s19 = sphi 0, %s23
      %p20 = scmp.ge.s32.totalorder %s19, 4
      %s29 = sphi 0, %s31
      %s32 = sphi 0, %s29
      %s33 = sphi 0, %s32
      %s49 = sphi 0, %s33
      %s55 = sphi 0, %s57
      %s58 = sphi 0, %s55
      %s59 = sphi 0, %s58
      %s75 = sphi 0, %s59
      %s79 = sphi 0, %s79
      %s81 = sphi 0, %s79
      %s82 = sphi 0, %s81
      %s96 = sphi 0, %s82
      %s100 = sphi 0, %s100
      %s102 = sphi 0, %s100
      %s103 = sphi 0, %s102
      %s117 = sphi 0, %s103
      %s123 = sphi 0, %s125
      %s126 = sphi 0, %s123
      %s127 = sphi 0, %s126
      %s143 = sphi 0, %s127
    $region4: #{tpu_custom_call.1} parent=1 // loop_header_branch
      %22 = sbr.rel (%p20) target = $region8
    $region5: #{tpu_custom_call.1} parent=1 // loop_body
      %s24 = ssub.s32 %s19, 1
      %s25 = ssub.s32 %s19, 2
      %s26 = sadd.s32 %s19, 1
      %s27 = ssub.s32 %s19, %s26
      %p28 = scmp.eq.s32.totalorder %s27, 0
      %s30 = sadd.s32 %s29, 1
      %s31 = scalar_select %p28, %s29, %s30
      %p34 = pneg %p28
      %p35 = scmp.eq.s32.totalorder %s19, 1
      %p36 = por %p34, %p35
      %p37 = scmp.ne.s32.totalorder %s29, %s32
      %p38 = scmp.eq.s32.totalorder %s19, 0
      %p39 = por %p37, %p38
      %p40 = scmp.ne.s32.totalorder %s29, %s32
      %p41 = scmp.eq.s32.totalorder %s24, 1
      %p42 = por %p40, %p41
      %p43 = scmp.ne.s32.totalorder %s32, %s33
      %p44 = scmp.eq.s32.totalorder %s24, 0
      %p45 = por %p43, %p44
      %p46 = scmp.ne.s32.totalorder %s32, %s33
      %p47 = scmp.eq.s32.totalorder %s25, 1
      %p48 = por %p46, %p47
      %p50 = scmp.ne.s32.totalorder %s33, %s49
      %p51 = scmp.eq.s32.totalorder %s25, 0
      %p52 = por %p50, %p51
      %s53 = ssub.s32 %s19, %s26
      %p54 = scmp.eq.s32.totalorder %s53, 0
      %s56 = sadd.s32 %s55, 1
      %s57 = scalar_select %p54, %s55, %s56
      %p60 = pneg %p54
      %p61 = scmp.eq.s32.totalorder %s19, 1
      %p62 = por %p60, %p61
      %p63 = scmp.ne.s32.totalorder %s55, %s58
      %p64 = scmp.eq.s32.totalorder %s19, 0
      %p65 = por %p63, %p64
      %p66 = scmp.ne.s32.totalorder %s55, %s58
      %p67 = scmp.eq.s32.totalorder %s24, 1
      %p68 = por %p66, %p67
      %p69 = scmp.ne.s32.totalorder %s58, %s59
      %p70 = scmp.eq.s32.totalorder %s24, 0
      %p71 = por %p69, %p70
      %p72 = scmp.ne.s32.totalorder %s58, %s59
      %p73 = scmp.eq.s32.totalorder %s25, 1
      %p74 = por %p72, %p73
      %p76 = scmp.ne.s32.totalorder %s59, %s75
      %p77 = scmp.eq.s32.totalorder %s25, 0
      %p78 = por %p76, %p77
      %s80 = sadd.s32 %s79, 1
      %p83 = scmp.eq.s32.totalorder %s19, 1
      %p84 = scmp.ne.s32.totalorder %s79, %s81
      %p85 = scmp.eq.s32.totalorder %s19, 0
      %p86 = por %p84, %p85
      %p87 = scmp.ne.s32.totalorder %s79, %s81
      %p88 = scmp.eq.s32.totalorder %s24, 1
      %p89 = por %p87, %p88
      %p90 = scmp.ne.s32.totalorder %s81, %s82
      %p91 = scmp.eq.s32.totalorder %s24, 0
      %p92 = por %p90, %p91
      %p93 = scmp.ne.s32.totalorder %s81, %s82
      %p94 = scmp.eq.s32.totalorder %s25, 1
      %p95 = por %p93, %p94
      %p97 = scmp.ne.s32.totalorder %s82, %s96
      %p98 = scmp.eq.s32.totalorder %s25, 0
      %p99 = por %p97, %p98
      %s101 = sadd.s32 %s100, 1
      %p104 = scmp.eq.s32.totalorder %s19, 1
      %p105 = scmp.ne.s32.totalorder %s100, %s102
      %p106 = scmp.eq.s32.totalorder %s19, 0
      %p107 = por %p105, %p106
      %p108 = scmp.ne.s32.totalorder %s100, %s102
      %p109 = scmp.eq.s32.totalorder %s24, 1
      %p110 = por %p108, %p109
      %p111 = scmp.ne.s32.totalorder %s102, %s103
      %p112 = scmp.eq.s32.totalorder %s24, 0
      %p113 = por %p111, %p112
      %p114 = scmp.ne.s32.totalorder %s102, %s103
      %p115 = scmp.eq.s32.totalorder %s25, 1
      %p116 = por %p114, %p115
      %p118 = scmp.ne.s32.totalorder %s103, %s117
      %p119 = scmp.eq.s32.totalorder %s25, 0
      %p120 = por %p118, %p119
      %s121 = ssub.s32 %s19, %s26
      %p122 = scmp.eq.s32.totalorder %s121, 0
      %s124 = sadd.s32 %s123, 1
      %s125 = scalar_select %p122, %s123, %s124
      %p128 = pneg %p122
      %p129 = scmp.eq.s32.totalorder %s19, 1
      %p130 = por %p128, %p129
      %p131 = scmp.ne.s32.totalorder %s123, %s126
      %p132 = scmp.eq.s32.totalorder %s19, 0
      %p133 = por %p131, %p132
      %p134 = scmp.ne.s32.totalorder %s123, %s126
      %p135 = scmp.eq.s32.totalorder %s24, 1
      %p136 = por %p134, %p135
      %p137 = scmp.ne.s32.totalorder %s126, %s127
      %p138 = scmp.eq.s32.totalorder %s24, 0
      %p139 = por %p137, %p138
      %p140 = scmp.ne.s32.totalorder %s126, %s127
      %p141 = scmp.eq.s32.totalorder %s25, 1
      %p142 = por %p140, %p141
      %p144 = scmp.ne.s32.totalorder %s127, %s143
      %p145 = scmp.eq.s32.totalorder %s25, 0
      %p146 = por %p144, %p145
      %p147 = scmp.le.s32.totalorder 1, %s19
      %p148 = scmp.lt.s32.totalorder %s19, 3
      %p149 = pnand %p147, %p148
      %p150 = pneg %p149
      // Predicated region
      $region9: #{tpu_custom_call.1} parent=5 // pred_check
        _
      $region10: #{tpu_custom_call.1} parent=5 // pred_check_branch
        %152 = sbr.rel (%p149) target = $region12
      $region11: #{tpu_custom_call.1} parent=5 // pred_region
        %s153 = ssub.s32 %s19, 1
        // Predicated region
        $region13: #{tpu_custom_call.1} parent=11 // pred_check
          %p154 = pneg %p92
        $region14: #{tpu_custom_call.1} parent=11 // pred_check_branch
          %156 = sbr.rel (%p154) target = $region16
        $region15: #{tpu_custom_call.1} parent=11 // pred_region
          _
        $region16: #{tpu_custom_call.1} parent=11 // pred_fallthru
          _
        // Predicated region
        $region17: #{tpu_custom_call.1} parent=11 // pred_check
          %p157 = pneg %p113
        $region18: #{tpu_custom_call.1} parent=11 // pred_check_branch
          %159 = sbr.rel (%p157) target = $region20
        $region19: #{tpu_custom_call.1} parent=11 // pred_region
          _
        $region20: #{tpu_custom_call.1} parent=11 // pred_fallthru
          _
      $region12: #{tpu_custom_call.1} parent=5 // pred_fallthru
        _
      %p160 = scmp.lt.s32.totalorder %s19, 2
      // Predicated region
      $region21: #{tpu_custom_call.1} parent=5 // pred_check
        %p161 = pneg %p160
      $region22: #{tpu_custom_call.1} parent=5 // pred_check_branch
        %163 = sbr.rel (%p161) target = $region24
      $region23: #{tpu_custom_call.1} parent=5 // pred_region
        // Predicated region
        $region25: #{tpu_custom_call.1} parent=23 // pred_check
          %p164 = pneg %p39
        $region26: #{tpu_custom_call.1} parent=23 // pred_check_branch
          %166 = sbr.rel (%p164) target = $region28
        $region27: #{tpu_custom_call.1} parent=23 // pred_region
          %s167 = sand.u32 %s29, 1
          %s168 = scalar_lea.sflag [#allocation3], %s167
          %s169 = sand.u32 %s29, 1
          %s170 = smul.addr %s169, 4
          %s171 = scalar_lea.vmem [#allocation2], %s170
          %s173 = ssub.s32 64, 64
          %174 = vsyncadd %s168, %s173
          %s175 = smul.addr %s19, 64
          %s176 = scalar_lea.hbm %s0, %s175
          %s178 = sshll.u32 %s171, 4
          %s179 = int_to_ptr.vmem [resolvable:$true] %s178
          %181 = dma.hbm_to_vmem [thread:$0]  %s176, 64, %s179, %s168
        $region28: #{tpu_custom_call.1} parent=23 // pred_fallthru
          _
        // Predicated region
        $region29: #{tpu_custom_call.1} parent=23 // pred_check
          %p182 = pneg %p65
        $region30: #{tpu_custom_call.1} parent=23 // pred_check_branch
          %184 = sbr.rel (%p182) target = $region32
        $region31: #{tpu_custom_call.1} parent=23 // pred_region
          %s185 = sand.u32 %s55, 1
          %s186 = scalar_lea.sflag [#allocation6], %s185
          %s187 = sand.u32 %s55, 1
          %s188 = scalar_lea.vmem [#allocation5], %s187
          %s190 = ssub.s32 16, 16
          %191 = vsyncadd %s186, %s190
          %s192 = smul.addr %s19, 16
          %s193 = scalar_lea.hbm %s1, %s192
          %s195 = sshll.u32 %s188, 4
          %s196 = int_to_ptr.vmem [resolvable:$true] %s195
          %198 = dma.hbm_to_vmem [thread:$0]  %s193, 16, %s196, %s186
        $region32: #{tpu_custom_call.1} parent=23 // pred_fallthru
          _
      $region24: #{tpu_custom_call.1} parent=5 // pred_fallthru
        _
      %p199 = scmp.le.s32.totalorder 1, %s19
      %p200 = scmp.lt.s32.totalorder %s19, 3
      %p201 = pnand %p199, %p200
      %p202 = pneg %p201
      // Predicated region
      $region33: #{tpu_custom_call.1} parent=5 // pred_check
        _
      $region34: #{tpu_custom_call.1} parent=5 // pred_check_branch
        %204 = sbr.rel (%p201) target = $region36
      $region35: #{tpu_custom_call.1} parent=5 // pred_region
        %s205 = ssub.s32 %s19, 1
        %s206 = sand.u32 %s32, 1
        %s207 = scalar_lea.sflag [#allocation3], %s206
        %s208 = sand.u32 %s32, 1
        %s209 = smul.addr %s208, 4
        %s210 = scalar_lea.vmem [#allocation2], %s209
        // Predicated region
        $region37: #{tpu_custom_call.1} parent=35 // pred_check
          %p211 = pneg %p45
        $region38: #{tpu_custom_call.1} parent=35 // pred_check_branch
          %213 = sbr.rel (%p211) target = $region40
        $region39: #{tpu_custom_call.1} parent=35 // pred_region
          %214 = dma.done %s207, 64
        $region40: #{tpu_custom_call.1} parent=35 // pred_fallthru
          _
        %s215 = sand.u32 %s58, 1
        %s216 = scalar_lea.sflag [#allocation6], %s215
        %s217 = sand.u32 %s58, 1
        %s218 = scalar_lea.vmem [#allocation5], %s217
        // Predicated region
        $region41: #{tpu_custom_call.1} parent=35 // pred_check
          %p219 = pneg %p71
        $region42: #{tpu_custom_call.1} parent=35 // pred_check_branch
          %221 = sbr.rel (%p219) target = $region44
        $region43: #{tpu_custom_call.1} parent=35 // pred_region
          %222 = dma.done %s216, 16
        $region44: #{tpu_custom_call.1} parent=35 // pred_fallthru
          _
        %s223 = sand.u32 %s32, 1
        %s224 = scalar_lea.sflag [#allocation3], %s223
        %s225 = sand.u32 %s32, 1
        %s226 = smul.addr %s225, 4
        %s227 = scalar_lea.vmem [#allocation2], %s226
        %p228 = pneg %p45
        %p229 = pneg %p42
        %s230 = sand.u32 %s58, 1
        %s231 = scalar_lea.sflag [#allocation6], %s230
        %s232 = sand.u32 %s58, 1
        %s233 = scalar_lea.vmem [#allocation5], %s232
        %p234 = pneg %p71
        %p235 = pneg %p68
        %p236 = pneg %p92
        %p237 = pneg %p89
        %p238 = pneg %p113
        %p239 = pneg %p110
        %p240 = pneg %p139
        %p241 = pneg %p136
        %s242 = sand.u32 %s126, 1
        %s243 = scalar_lea.sflag [#allocation4], %s242
        %s244 = sand.u32 %s126, 1
        %s245 = smul.addr %s244, 4
        %s246 = scalar_lea.vmem [#allocation7], %s245
        %v247 = vld [vmem:[%s210] sm:$0xf]
        %v248 = vunpack.c.l.bf16 %v247
        %v249 = vld [vmem:[%s2] sm:$0x1]
        %v250 = vld [vmem:[%s3] sm:$0x1]
        %vm251 = vcmask 261120
        %v252 = vsel %vm251, %v248, 0.0
        %253 = vadd.xlane.f32.xlu0 %v252
        %v254 = vpop.xlane.xlu0 %253
        %v255 = vrcp.pop 32.0
        %v256 = vmul.f32 %v254, %v255
        %v257 = vsub.f32 %v248, %v256
        %v258 = vmul.f32 %v257, %v257
        %v259 = vsel %vm251, %v258, 0.0
        %260 = vadd.xlane.f32.xlu0 %v259
        %v261 = vpop.xlane.xlu0 %260
        %v262 = vmul.f32 %v261, %v255
        %v263 = vadd.f32 %v262, 1e-12
        %v264 = vrsqrt.pop %v263
        %v265 = vmul.f32 %v257, %v264
        %v267 = vlaneseq
        %v268 = vshrl.u32 %v267, 7
        %v269 = vsub.s32 0, %v268
        %v270 = vrot.slane %v249, %v269
        %v272 = vmul.f32 %v265, %v270
        %v274 = vlaneseq
        %v275 = vshrl.u32 %v274, 7
        %v276 = vsub.s32 0, %v275
        %v277 = vrot.slane %v250, %v276
        %v279 = vadd.f32 %v272, %v277
        %v280 = vld [vmem:[%s218] sm:$0x1]
        %v282 = vlaneseq
        %v283 = vshrl.u32 %v282, 7
        %v284 = vsub.s32 0, %v283
        %v285 = vrot.slane %v280, %v284
        %v287 = vadd.f32 %v279, %v285
        %v288 = vsel %vm251, %v287, 0.0
        %289 = vadd.xlane.f32.xlu0 %v288
        %v290 = vpop.xlane.xlu0 %289
        %v291 = vmul.f32 %v290, %v255
        %v292 = vsub.f32 %v287, %v291
        %v293 = vmul.f32 %v292, %v292
        %v294 = vsel %vm251, %v293, 0.0
        %295 = vadd.xlane.f32.xlu0 %v294
        %v296 = vpop.xlane.xlu0 %295
        %v297 = vmul.f32 %v296, %v255
        %v298 = vadd.f32 %v297, 1e-12
        %v299 = vrsqrt.pop %v298
        %v300 = vmul.f32 %v292, %v299
        %v301 = vmul.f32 %v300, %v270
        %v302 = vadd.f32 %v301, %v277
        %v303 = vpack.c.bf16 %v302, %v302
        %vm304 = vcmask 257024
        %305 = vst.msk [vmem:[%s246] sm:$0xf] %vm304, %v303
        %s306 = sand.u32 %s126, 1
        %s307 = scalar_lea.sflag [#allocation4], %s306
        %s308 = sand.u32 %s126, 1
        %s309 = smul.addr %s308, 4
        %s310 = scalar_lea.vmem [#allocation7], %s309
        // Predicated region
        $region45: #{tpu_custom_call.1} parent=35 // pred_check
          %p311 = pneg %p136
        $region46: #{tpu_custom_call.1} parent=35 // pred_check_branch
          %313 = sbr.rel (%p311) target = $region48
        $region47: #{tpu_custom_call.1} parent=35 // pred_region
          %s315 = ssub.s32 64, 64
          %316 = vsyncadd %s307, %s315
          %s317 = smul.addr %s24, 64
          %s318 = scalar_lea.hbm %s4, %s317
          %s320 = sshll.u32 %s310, 4
          %s321 = int_to_ptr.vmem [resolvable:$true] %s320
          %323 = dma.vmem_to_hbm [thread:$0]  %s321, 64, %s318, %s307
        $region48: #{tpu_custom_call.1} parent=35 // pred_fallthru
          _
      $region36: #{tpu_custom_call.1} parent=5 // pred_fallthru
        _
      %p324 = scmp.le.s32.totalorder 2, %s19
      // Predicated region
      $region49: #{tpu_custom_call.1} parent=5 // pred_check
        %p325 = pneg %p324
      $region50: #{tpu_custom_call.1} parent=5 // pred_check_branch
        %327 = sbr.rel (%p325) target = $region52
      $region51: #{tpu_custom_call.1} parent=5 // pred_region
        %s328 = ssub.s32 %s19, 2
        // Predicated region
        $region53: #{tpu_custom_call.1} parent=51 // pred_check
          %p329 = pneg %p142
        $region54: #{tpu_custom_call.1} parent=51 // pred_check_branch
          %331 = sbr.rel (%p329) target = $region56
        $region55: #{tpu_custom_call.1} parent=51 // pred_region
          %s332 = sand.u32 %s127, 1
          %s333 = scalar_lea.sflag [#allocation4], %s332
          %s334 = sand.u32 %s127, 1
          %s335 = smul.addr %s334, 4
          %s336 = scalar_lea.vmem [#allocation7], %s335
          %337 = dma.done %s333, 64
        $region56: #{tpu_custom_call.1} parent=51 // pred_fallthru
          _
      $region52: #{tpu_custom_call.1} parent=5 // pred_fallthru
        _
    $region6: #{tpu_custom_call.1} parent=1 // loop_footer
      %s23 = sadd.s32 1, %s19
    $region7: #{tpu_custom_call.1} parent=1 // loop_footer_branch
      %18 = sbr.rel target = $region3
    $region8: #{tpu_custom_call.1} parent=1 // loop_exit
      _
    %338 = vsyncpa [#allocation3], 1
    %s339 = scalar_lea.sflag [#allocation3], 1
    %340 = vsyncpa %s339, 1
    %341 = vsyncpa [#allocation6], 1
    %s342 = scalar_lea.sflag [#allocation6], 1
    %343 = vsyncpa %s342, 1
    %344 = vsyncpa [#allocation4], 1
    %s345 = scalar_lea.sflag [#allocation4], 1
    %346 = vsyncpa %s345, 1

</llo_original>
